<compile_context>
chip_gen: v5e
topology: v5e:2x2
jax: 0.10.0
libtpu: 0.0.40
codegen_flags: <defaults>
</compile_context>

<pallas_src>
import functools

import jax
import jax.numpy as jnp
from jax.experimental import pallas as pl
from jax.experimental.pallas import tpu as pltpu


def _concat_kernel(x_ref, w_ref, o_ref, *, cx: int):
    # x_ref: (1, Cx,  thw)   current (batch, spatial-tile) slab of x
    # w_ref: (1, Cw,  thw)   positional-encoding weights (same for all b)
    # o_ref: (1, Cx+Cw, thw) output slab
    o_ref[:, :cx, :] = x_ref[...]
    # Fold any dtype cast of w into the store (no extra XLA pass outside).
    o_ref[:, cx:, :] = w_ref[...].astype(o_ref.dtype)


def _positional_encoder_2d_pallas(x: jax.Array, w: jax.Array) -> jax.Array:
    """Pallas path: concat(x, broadcast(w)) along channels. NCHW layout."""
    B, Cx, H, W = x.shape
    wb, Cw, Hw, Ww = w.shape
    assert wb == 1, "w must have leading batch dim of 1"
    assert (Hw, Ww) == (H, W), "spatial dims of w must match x"

    HW = H * W
    Cout = Cx + Cw
    out_dtype = x.dtype
    itemsize = jnp.dtype(out_dtype).itemsize

    # Free reshapes (contiguous): lane-dense last dim = H*W.
    x2 = x.reshape(B, Cx, HW)
    w2 = w.reshape(1, Cw, HW)

    # Spatial tile sized so that double-buffered x/w/out blocks fit the
    # per-step VMEM budget (conservative for v7x's 64 MiB physical VMEM).
    vmem_block_budget = 32 * 1024 * 1024
    per_elem = 2 * (Cx + Cw + Cout) * itemsize  # double-buffered in + out
    max_thw = max(128, (vmem_block_budget // per_elem) // 128 * 128)
    if HW <= max_thw:
        thw, n_hw = HW, 1            # one full-extent, lane-dense block
    else:
        thw, n_hw = max_thw, pl.cdiv(HW, max_thw)

    kernel = functools.partial(_concat_kernel, cx=Cx)

    out3 = pl.pallas_call(
        kernel,
        out_shape=jax.ShapeDtypeStruct((B, Cout, HW), out_dtype),
        grid_spec=pltpu.PrefetchScalarGridSpec(
            num_scalar_prefetch=0,
            grid=(B, n_hw),
            in_specs=[
                pl.BlockSpec((1, Cx, thw), lambda b, j: (b, 0, j)),
                pl.BlockSpec((1, Cw, thw), lambda b, j: (0, 0, j)),
            ],
            out_specs=pl.BlockSpec((1, Cout, thw), lambda b, j: (b, 0, j)),
        ),
        compiler_params=pltpu.CompilerParams(
            dimension_semantics=("parallel", "parallel"),
            vmem_limit_bytes=48 * 1024 * 1024,
        ),
        # Pure data movement: read x once, read w (re-fetched per batch),
        # write the concatenated output.
        cost_estimate=pl.CostEstimate(
            flops=0,
            transcendentals=0,
            bytes_accessed=int(2 * x.size * itemsize
                               + (B + 1) * w.size * itemsize),
        ),
    )(x2, w2)

    return out3.reshape(B, Cout, H, W)


_PALLAS_MIN_OUT_BYTES = 1 << 20  # ~1 MiB: below this, XLA concat wins


def positional_encoder_2d(x: jax.Array, w: jax.Array) -> jax.Array:
    """Equivalent of PositionalEncoder2D.forward.

    x: (B, Cx, H, W), w: (1, Cw, H, W) -> (B, Cx + Cw, H, W)
    Dispatches tiny inputs to plain XLA (pallas_call launch overhead would
    dominate); larger inputs go through the Pallas kernel.
    """
    B = x.shape[0]
    out_bytes = (x.size + B * w.size) * jnp.dtype(x.dtype).itemsize
    if out_bytes < _PALLAS_MIN_OUT_BYTES:
        enc = jnp.broadcast_to(w.astype(x.dtype), (B,) + w.shape[1:])
        return jnp.concatenate([x, enc], axis=1)
    return _positional_encoder_2d_pallas(x, w)


if __name__ == "__main__":
    # Small shapes consistent with the module: batch=2, channels=4, spatial=16.
    B, C, H, W = 2, 4, 16, 16

    key = jax.random.PRNGKey(0)
    kx, kw = jax.random.split(key)

    x = jax.random.normal(kx, (B, C, H, W), dtype=jnp.float32)
    # Deterministic init mirroring torch.rand((1, c, h, w)) - 0.5
    w = jax.random.uniform(kw, (1, C, H, W), dtype=jnp.float32) - 0.5

    # Reference in plain JAX.
    ref = jnp.concatenate([x, jnp.broadcast_to(w, (B, C, H, W))], axis=1)

    # Exercise the Pallas kernel directly (demo shapes are tiny, so the
    # public dispatcher would route them to XLA).
    out = _positional_encoder_2d_pallas(x, w)
    out = jax.block_until_ready(out)
    assert out.shape == (B, 2 * C, H, W)
    assert jnp.allclose(out, ref), "pallas kernel mismatch vs reference"

    # Also sanity-check the dispatching wrapper.
    out2 = jax.block_until_ready(positional_encoder_2d(x, w))
    assert jnp.allclose(out2, ref), "dispatcher mismatch vs reference"

    print("KERNEL_OK")
</pallas_src>

<mosaic_0001>
module attributes {stable_mosaic.version = 11 : i64} {
  func.func @_concat_kernel(%arg0: i32, %arg1: i32, %arg2: memref<1x4x256xf32, #tpu.memory_space<vmem>>, %arg3: memref<1x4x256xf32, #tpu.memory_space<vmem>>, %arg4: memref<1x8x256xf32, #tpu.memory_space<vmem>>) attributes {dimension_semantics = [#tpu.dimension_semantics<parallel>, #tpu.dimension_semantics<parallel>], iteration_bounds = array<i64: 2, 1>, scalar_prefetch = 0 : i64, scratch_operands = 0 : i64, tpu.core_type = #tpu.core_type<tc>, window_params = [{transform_indices = @transform_0, window_bounds = array<i64: 1, 4, 256>}, {transform_indices = @transform_1, window_bounds = array<i64: 1, 4, 256>}, {transform_indices = @transform_2, window_bounds = array<i64: 1, 8, 256>}]} {
    %c0 = arith.constant 0 : index
    %c0_0 = arith.constant 0 : index
    %c0_1 = arith.constant 0 : index
    %0 = vector.load %arg2[%c0, %c0_0, %c0_1] : memref<1x4x256xf32, #tpu.memory_space<vmem>>, vector<1x4x256xf32>
    %c0_2 = arith.constant 0 : index
    %c0_3 = arith.constant 0 : index
    %c0_4 = arith.constant 0 : index
    %1 = vector.load %arg4[%c0_2, %c0_3, %c0_4] : memref<1x8x256xf32, #tpu.memory_space<vmem>>, vector<1x4x256xf32>
    tpu.vector_store %arg4[%c0_2, %c0_3, %c0_4], %0 {strides = array<i32>} : memref<1x8x256xf32, #tpu.memory_space<vmem>>, vector<1x4x256xf32>,
    %c0_5 = arith.constant 0 : index
    %c0_6 = arith.constant 0 : index
    %c0_7 = arith.constant 0 : index
    %2 = vector.load %arg3[%c0_5, %c0_6, %c0_7] : memref<1x4x256xf32, #tpu.memory_space<vmem>>, vector<1x4x256xf32>
    %c0_8 = arith.constant 0 : index
    %c4 = arith.constant 4 : index
    %c0_9 = arith.constant 0 : index
    %3 = vector.load %arg4[%c0_8, %c4, %c0_9] : memref<1x8x256xf32, #tpu.memory_space<vmem>>, vector<1x4x256xf32>
    tpu.vector_store %arg4[%c0_8, %c4, %c0_9], %2 {strides = array<i32>} : memref<1x8x256xf32, #tpu.memory_space<vmem>>, vector<1x4x256xf32>,
    return
  }
  func.func @transform_0(%arg0: i32, %arg1: i32) -> (i32, i32, i32) {
    %c0_i32 = arith.constant 0 : i32
    %c0_i32_0 = arith.constant 0 : i32
    return %arg0, %c0_i32, %arg1 : i32, i32, i32
  }
  func.func @transform_1(%arg0: i32, %arg1: i32) -> (i32, i32, i32) {
    %c0_i32 = arith.constant 0 : i32
    %c0_i32_0 = arith.constant 0 : i32
    %c0_i32_1 = arith.constant 0 : i32
    return %c0_i32, %c0_i32_0, %arg1 : i32, i32, i32
  }
  func.func @transform_2(%arg0: i32, %arg1: i32) -> (i32, i32, i32) {
    %c0_i32 = arith.constant 0 : i32
    %c0_i32_0 = arith.constant 0 : i32
    return %arg0, %c0_i32, %arg1 : i32, i32, i32
  }
}

</mosaic_0001>

<llo_original>
// kernel: tpu_custom_call.1
$region0: #{tpu_custom_call.1}
  #allocation0 [shape = 'u32[]', space=smem, size = 0x4, offset = 0x4, fixed_abs, tag = 'smem constant byte address 0x4 - core index']
  #allocation1 [shape = 'u32[72,128]{1,0:T(1,128)}', space=vmem, size = 0x9000, scoped, tag = 'internal scratch']
  %s0 = inlined_call_operand.hbm [shape: f32[2,4,256], index: 0, kind: input, shape index: {}]
  %s1 = inlined_call_operand.hbm [shape: f32[1,4,256], index: 1, kind: input, shape index: {}]
  %s2 = inlined_call_operand.hbm [shape: f32[2,8,256], index: 2, kind: output, shape index: {}]
  %s3 = sld [smem:[#allocation0]]
  $region49: #{tpu_custom_call.1} parent=0
    _
  %s5 = ssub.s32 1, %s3
  %s6 = scalar_select 0, %s5, %s3
  $region1: #{tpu_custom_call.1} parent=0
    #allocation2 [shape = 'u8[8192]{0}', space=vmem, size = 0x2000, scoped, tag = 'input window, operand 0']
    #allocation3 [shape = 's32[2]{0}', space=sflag, size = 0x8, scoped, tag = 'scoped memory for tpu_custom_call.1']
    #allocation4 [shape = 's32[2]{0}', space=sflag, size = 0x8, scoped, tag = 'scoped memory for tpu_custom_call.1']
    #allocation5 [shape = 'u8[4096]{0}', space=vmem, size = 0x1000, scoped, tag = 'input window, operand 1, single buffered']
    #allocation6 [shape = 's32[1]{0}', space=sflag, size = 0x4, scoped, tag = 'scoped memory for tpu_custom_call.1']
    #allocation7 [shape = 'u8[16384]{0}', space=vmem, size = 0x4000, scoped, tag = 'output window, operand 0']
    %7 = vsyncpa [#allocation3], 0
    %s8 = scalar_lea.sflag [#allocation3], 1
    %9 = vsyncpa %s8, 0
    %10 = vsyncpa [#allocation6], 0
    %11 = vsyncpa [#allocation4], 0
    %s12 = scalar_lea.sflag [#allocation4], 1
    %13 = vsyncpa %s12, 0
    loop: start=0, step=1, limit=4
    $region2: #{tpu_custom_call.1} parent=1 // loop_pre_header
      _
    $region3: #{tpu_custom_call.1} parent=1 // loop_header
      %s15 = sphi 0, %s19
      %p16 = scmp.ge.s32.totalorder %s15, 4
      %s22 = sphi 0, %s34
      %s23 = sphi 0, %s30
      %s24 = sphi 0, %s22
      %s25 = sphi 0, %s23
      %s26 = sphi 0, %s24
      %s27 = sphi 0, %s25
      %s39 = sphi 0, %s41
      %s42 = sphi 0, %s39
      %s43 = sphi 0, %s42
      %s59 = sphi 0, %s43
      %s65 = sphi 0, %s67
      %s68 = sphi 0, %s65
      %s69 = sphi 0, %s68
      %s85 = sphi 0, %s69
      %s93 = sphi 0, %s95
      %s96 = sphi 0, %s93
      %s97 = sphi 0, %s96
      %s113 = sphi 0, %s97
    $region4: #{tpu_custom_call.1} parent=1 // loop_header_branch
      %18 = sbr.rel (%p16) target = $region8
    $region5: #{tpu_custom_call.1} parent=1 // loop_body
      %s20 = ssub.s32 %s15, 1
      %s21 = ssub.s32 %s15, 2
      %s28 = sadd.s32 1, %s23
      %p29 = scmp.ge.s32.totalorder %s28, 1
      %s30 = scalar_select %p29, 0, %s28
      %s31 = sadd.s32 1, %s22
      %s32 = scalar_select %p29, %s31, %s22
      %p33 = scmp.ge.s32.totalorder %s32, 2
      %s34 = scalar_select %p33, 0, %s32
      %s35 = ssub.s32 %s22, %s34
      %s36 = ssub.s32 %s23, %s30
      %s37 = sor.u32 %s35, %s36
      %p38 = scmp.eq.s32.totalorder %s37, 0
      %s40 = sadd.s32 %s39, 1
      %s41 = scalar_select %p38, %s39, %s40
      %p44 = pneg %p38
      %p45 = scmp.eq.s32.totalorder %s15, 1
      %p46 = por %p44, %p45
      %p47 = scmp.ne.s32.totalorder %s39, %s42
      %p48 = scmp.eq.s32.totalorder %s15, 0
      %p49 = por %p47, %p48
      %p50 = scmp.ne.s32.totalorder %s39, %s42
      %p51 = scmp.eq.s32.totalorder %s20, 1
      %p52 = por %p50, %p51
      %p53 = scmp.ne.s32.totalorder %s42, %s43
      %p54 = scmp.eq.s32.totalorder %s20, 0
      %p55 = por %p53, %p54
      %p56 = scmp.ne.s32.totalorder %s42, %s43
      %p57 = scmp.eq.s32.totalorder %s21, 1
      %p58 = por %p56, %p57
      %p60 = scmp.ne.s32.totalorder %s43, %s59
      %p61 = scmp.eq.s32.totalorder %s21, 0
      %p62 = por %p60, %p61
      %s63 = ssub.s32 %s23, %s30
      %p64 = scmp.eq.s32.totalorder %s63, 0
      %s66 = sadd.s32 %s65, 1
      %s67 = scalar_select %p64, %s65, %s66
      %p70 = pneg %p64
      %p71 = scmp.eq.s32.totalorder %s15, 1
      %p72 = por %p70, %p71
      %p73 = scmp.ne.s32.totalorder %s65, %s68
      %p74 = scmp.eq.s32.totalorder %s15, 0
      %p75 = por %p73, %p74
      %p76 = scmp.ne.s32.totalorder %s65, %s68
      %p77 = scmp.eq.s32.totalorder %s20, 1
      %p78 = por %p76, %p77
      %p79 = scmp.ne.s32.totalorder %s68, %s69
      %p80 = scmp.eq.s32.totalorder %s20, 0
      %p81 = por %p79, %p80
      %p82 = scmp.ne.s32.totalorder %s68, %s69
      %p83 = scmp.eq.s32.totalorder %s21, 1
      %p84 = por %p82, %p83
      %p86 = scmp.ne.s32.totalorder %s69, %s85
      %p87 = scmp.eq.s32.totalorder %s21, 0
      %p88 = por %p86, %p87
      %s89 = ssub.s32 %s22, %s34
      %s90 = ssub.s32 %s23, %s30
      %s91 = sor.u32 %s89, %s90
      %p92 = scmp.eq.s32.totalorder %s91, 0
      %s94 = sadd.s32 %s93, 1
      %s95 = scalar_select %p92, %s93, %s94
      %p98 = pneg %p92
      %p99 = scmp.eq.s32.totalorder %s15, 1
      %p100 = por %p98, %p99
      %p101 = scmp.ne.s32.totalorder %s93, %s96
      %p102 = scmp.eq.s32.totalorder %s15, 0
      %p103 = por %p101, %p102
      %p104 = scmp.ne.s32.totalorder %s93, %s96
      %p105 = scmp.eq.s32.totalorder %s20, 1
      %p106 = por %p104, %p105
      %p107 = scmp.ne.s32.totalorder %s96, %s97
      %p108 = scmp.eq.s32.totalorder %s20, 0
      %p109 = por %p107, %p108
      %p110 = scmp.ne.s32.totalorder %s96, %s97
      %p111 = scmp.eq.s32.totalorder %s21, 1
      %p112 = por %p110, %p111
      %p114 = scmp.ne.s32.totalorder %s97, %s113
      %p115 = scmp.eq.s32.totalorder %s21, 0
      %p116 = por %p114, %p115
      %p117 = scmp.le.s32.totalorder 1, %s15
      %p118 = scmp.lt.s32.totalorder %s15, 3
      %p119 = pnand %p117, %p118
      %p120 = pneg %p119
      // Predicated region
      $region9: #{tpu_custom_call.1} parent=5 // pred_check
        _
      $region10: #{tpu_custom_call.1} parent=5 // pred_check_branch
        %122 = sbr.rel (%p119) target = $region12
      $region11: #{tpu_custom_call.1} parent=5 // pred_region
        %s123 = ssub.s32 %s15, 1
        // Predicated region
        $region13: #{tpu_custom_call.1} parent=11 // pred_check
          %p124 = pneg %p81
        $region14: #{tpu_custom_call.1} parent=11 // pred_check_branch
          %126 = sbr.rel (%p124) target = $region16
        $region15: #{tpu_custom_call.1} parent=11 // pred_region
          %s127 = smul.u32 2, %s25
          %129 = vsyncadd [#allocation6], 0
          %s130 = smul.addr %s127, 4
          %s131 = scalar_lea.hbm %s1, %s130
          %s133 = sshll.u32 %s131, 4
          %s134 = int_to_ptr.hbm [resolvable:$true] %s133
          %s135 = sshll.u32 [#allocation5], 4
          %s136 = int_to_ptr.vmem [resolvable:$true] %s135
          %138 = dma.hbm_to_vmem [thread:$0]  %s134, 128, %s136, [#allocation6]
        $region16: #{tpu_custom_call.1} parent=11 // pred_fallthru
          _
      $region12: #{tpu_custom_call.1} parent=5 // pred_fallthru
        _
      %p139 = scmp.lt.s32.totalorder %s15, 2
      // Predicated region
      $region17: #{tpu_custom_call.1} parent=5 // pred_check
        %p140 = pneg %p139
      $region18: #{tpu_custom_call.1} parent=5 // pred_check_branch
        %142 = sbr.rel (%p140) target = $region20
      $region19: #{tpu_custom_call.1} parent=5 // pred_region
        // Predicated region
        $region21: #{tpu_custom_call.1} parent=19 // pred_check
          %p143 = pneg %p49
        $region22: #{tpu_custom_call.1} parent=19 // pred_check_branch
          %145 = sbr.rel (%p143) target = $region24
        $region23: #{tpu_custom_call.1} parent=19 // pred_region
          %s146 = sand.u32 %s39, 1
          %s147 = scalar_lea.sflag [#allocation3], %s146
          %s148 = sand.u32 %s39, 1
          %s149 = smul.addr %s148, 8
          %s150 = scalar_lea.vmem [#allocation2], %s149
          %s151 = smul.u32 2, %s23
          %153 = vsyncadd %s147, 0
          %s154 = smul.addr %s22, 2
          %s155 = sadd.s32 %s151, %s154
          %s156 = smul.addr %s155, 4
          %s157 = scalar_lea.hbm %s0, %s156
          %s159 = sshll.u32 %s157, 4
          %s160 = int_to_ptr.hbm [resolvable:$true] %s159
          %s161 = sshll.u32 %s150, 4
          %s162 = int_to_ptr.vmem [resolvable:$true] %s161
          %164 = dma.hbm_to_vmem [thread:$0]  %s160, 128, %s162, %s147
        $region24: #{tpu_custom_call.1} parent=19 // pred_fallthru
          _
      $region20: #{tpu_custom_call.1} parent=5 // pred_fallthru
        _
      %p165 = scmp.le.s32.totalorder 1, %s15
      %p166 = scmp.lt.s32.totalorder %s15, 3
      %p167 = pnand %p165, %p166
      %p168 = pneg %p167
      // Predicated region
      $region25: #{tpu_custom_call.1} parent=5 // pred_check
        _
      $region26: #{tpu_custom_call.1} parent=5 // pred_check_branch
        %170 = sbr.rel (%p167) target = $region28
      $region27: #{tpu_custom_call.1} parent=5 // pred_region
        %s171 = ssub.s32 %s15, 1
        %s172 = sand.u32 %s42, 1
        %s173 = scalar_lea.sflag [#allocation3], %s172
        %s174 = sand.u32 %s42, 1
        %s175 = smul.addr %s174, 8
        %s176 = scalar_lea.vmem [#allocation2], %s175
        // Predicated region
        $region29: #{tpu_custom_call.1} parent=27 // pred_check
          %p177 = pneg %p55
        $region30: #{tpu_custom_call.1} parent=27 // pred_check_branch
          %179 = sbr.rel (%p177) target = $region32
        $region31: #{tpu_custom_call.1} parent=27 // pred_region
          %181 = dma.done %s173, 128
        $region32: #{tpu_custom_call.1} parent=27 // pred_fallthru
          _
        // Predicated region
        $region33: #{tpu_custom_call.1} parent=27 // pred_check
          %p182 = pneg %p81
        $region34: #{tpu_custom_call.1} parent=27 // pred_check_branch
          %184 = sbr.rel (%p182) target = $region36
        $region35: #{tpu_custom_call.1} parent=27 // pred_region
          %186 = dma.done [#allocation6], 128
        $region36: #{tpu_custom_call.1} parent=27 // pred_fallthru
          _
        %s187 = sand.u32 %s42, 1
        %s188 = scalar_lea.sflag [#allocation3], %s187
        %s189 = sand.u32 %s42, 1
        %s190 = smul.addr %s189, 8
        %s191 = scalar_lea.vmem [#allocation2], %s190
        %p192 = pneg %p55
        %p193 = pneg %p52
        %p194 = pneg %p81
        %p195 = pneg %p78
        %p196 = pneg %p109
        %p197 = pneg %p106
        %s198 = sand.u32 %s96, 1
        %s199 = scalar_lea.sflag [#allocation4], %s198
        %s200 = sand.u32 %s96, 1
        %s201 = smul.addr %s200, 16
        %s202 = scalar_lea.vmem [#allocation7], %s201
        %s203 = smul.u32 2, %s25
        %s204 = smul.u32 2, %s25
        %s205 = smul.u32 2, %s25
        %v206 = vld [vmem:[%s176] sm:$0xff]
        %208 = vst [vmem:[#allocation1] ss:$2 sm:$0xff] %v206
        %v209 = vld.sshfl [vmem:[#allocation1] sm:$0xff pattern:$0x75316420]
        %v210 = vld.sshfl [vmem:[#allocation1 + $0x8] sm:$0xff pattern:$0x75316420]
        %213 = vst [vmem:[%s202] sm:$0xf] %v209
        %214 = vst [vmem:[%s202 + $0x8] sm:$0xf] %v210
        %v215 = vld [vmem:[#allocation5] sm:$0xff]
        %s217 = scalar_lea.vmem [#allocation1], 1
        %218 = vst [vmem:[%s217] ss:$2 sm:$0xff] %v215
        %v219 = vld.sshfl [vmem:[#allocation1] sm:$0xff pattern:$0x75316420]
        %v220 = vld.sshfl [vmem:[#allocation1 + $0x8] sm:$0xff pattern:$0x75316420]
        %223 = vst [vmem:[%s202] sm:$0xf0] %v219
        %224 = vst [vmem:[%s202 + $0x8] sm:$0xf0] %v220
        %s225 = sand.u32 %s96, 1
        %s226 = scalar_lea.sflag [#allocation4], %s225
        %s227 = sand.u32 %s96, 1
        %s228 = smul.addr %s227, 16
        %s229 = scalar_lea.vmem [#allocation7], %s228
        // Predicated region
        $region37: #{tpu_custom_call.1} parent=27 // pred_check
          %p230 = pneg %p106
        $region38: #{tpu_custom_call.1} parent=27 // pred_check_branch
          %232 = sbr.rel (%p230) target = $region40
        $region39: #{tpu_custom_call.1} parent=27 // pred_region
          %s233 = smul.u32 2, %s25
          %235 = vsyncadd %s226, 0
          %s236 = smul.addr %s24, 2
          %s237 = sadd.s32 %s233, %s236
          %s238 = smul.addr %s237, 8
          %s239 = scalar_lea.hbm %s2, %s238
          %s241 = sshll.u32 %s229, 4
          %s242 = int_to_ptr.vmem [resolvable:$true] %s241
          %s243 = sshll.u32 %s239, 4
          %s244 = int_to_ptr.hbm [resolvable:$true] %s243
          %246 = dma.vmem_to_hbm [thread:$0]  %s242, 256, %s244, %s226
        $region40: #{tpu_custom_call.1} parent=27 // pred_fallthru
          _
      $region28: #{tpu_custom_call.1} parent=5 // pred_fallthru
        _
      %p247 = scmp.le.s32.totalorder 2, %s15
      // Predicated region
      $region41: #{tpu_custom_call.1} parent=5 // pred_check
        %p248 = pneg %p247
      $region42: #{tpu_custom_call.1} parent=5 // pred_check_branch
        %250 = sbr.rel (%p248) target = $region44
      $region43: #{tpu_custom_call.1} parent=5 // pred_region
        %s251 = ssub.s32 %s15, 2
        // Predicated region
        $region45: #{tpu_custom_call.1} parent=43 // pred_check
          %p252 = pneg %p112
        $region46: #{tpu_custom_call.1} parent=43 // pred_check_branch
          %254 = sbr.rel (%p252) target = $region48
        $region47: #{tpu_custom_call.1} parent=43 // pred_region
          %s255 = sand.u32 %s97, 1
          %s256 = scalar_lea.sflag [#allocation4], %s255
          %s257 = sand.u32 %s97, 1
          %s258 = smul.addr %s257, 16
          %s259 = scalar_lea.vmem [#allocation7], %s258
          %261 = dma.done %s256, 256
        $region48: #{tpu_custom_call.1} parent=43 // pred_fallthru
          _
      $region44: #{tpu_custom_call.1} parent=5 // pred_fallthru
        _
    $region6: #{tpu_custom_call.1} parent=1 // loop_footer
      %s19 = sadd.s32 1, %s15
    $region7: #{tpu_custom_call.1} parent=1 // loop_footer_branch
      %14 = sbr.rel target = $region3
    $region8: #{tpu_custom_call.1} parent=1 // loop_exit
      _
    %262 = vsyncpa [#allocation3], 1
    %s263 = scalar_lea.sflag [#allocation3], 1
    %264 = vsyncpa %s263, 1
    %265 = vsyncpa [#allocation6], 1
    %266 = vsyncpa [#allocation4], 1
    %s267 = scalar_lea.sflag [#allocation4], 1
    %268 = vsyncpa %s267, 1

</llo_original>
